<compile_context>
chip_gen: v7x
topology: tpu7x:2x2x1
jax: 0.10.0
libtpu: 0.0.40
codegen_flags: <defaults>
</compile_context>

<pallas_src>
import jax
import jax.numpy as jnp
from jax.experimental import pallas as pl
from jax.experimental.pallas import tpu as pltpu


def conv_bn_relu_kernel(x_ref, w_ref, scale_ref, bias_ref, o_ref):
    """One (batch block, Cout tile) per grid step.

    x_ref:     (NB, H + KH - 1, W, KW*Cin)  kw-packed, H-padded input, bf16
    w_ref:     (KH*KW*Cin, TCO)             im2col weight slab, bf16
    scale_ref: (1, TCO)  folded BN scale  = gamma / sqrt(var + eps), f32
    bias_ref:  (1, TCO)  folded BN bias   = beta - mean * scale,     f32
    o_ref:     (NB, H, W, TCO)              f32 output tile (lane-dense TCO)
    """
    NB, H, W, TCO = o_ref.shape
    KWC = x_ref.shape[3]                 # KW * Cin
    KH = w_ref.shape[0] // KWC
    M = NB * H * W

    # im2col patch: KH H-shifted windows concatenated on the lane axis.
    # The kw shift was packed onto lanes in the wrapper, so the only in-kernel
    # shifts are along H (free addressing) -> no per-tap relayout copies.
    patch = jnp.concatenate(
        [x_ref[:, kh:kh + H, :, :].reshape(M, KWC) for kh in range(KH)],
        axis=-1)

    # Single MXU matmul: bf16 operands, f32 accumulation.
    acc = jnp.dot(patch, w_ref[...], preferred_element_type=jnp.float32)

    # Fused BatchNorm (eval mode, folded) + ReLU epilogue in f32.
    y = acc * scale_ref[0] + bias_ref[0]
    y = jnp.maximum(y, 0.0)
    o_ref[...] = y.reshape(NB, H, W, TCO).astype(o_ref.dtype)


def conv_bn_relu(x_nchw, w_hwio, scale, bias, *, cout_tile=128, target_rows=256):
    """x_nchw: (N, Cin, H, W) f32; w_hwio: (KH, KW, Cin, Cout); returns NCHW."""
    N, Cin, H, W = x_nchw.shape
    KH, KW, _, Cout = w_hwio.shape
    ph, pw = KH // 2, KW // 2            # autopad for stride 1, dilation 1

    cout_pad = ((Cout + cout_tile - 1) // cout_tile) * cout_tile

    # ---- wrapper-side layout prep (plain XLA glue) -------------------------
    # NCHW -> NHWC, 'same' pad, then pack the KW taps onto the lane axis:
    #   x_kw[n, h, w, kw*Cin + c] = x_pad[n, h, w + kw, c]
    x = jnp.transpose(x_nchw, (0, 2, 3, 1))
    xp = jnp.pad(x, ((0, 0), (ph, ph), (pw, pw), (0, 0)))
    x_kw = jnp.concatenate(
        [xp[:, :, kw:kw + W, :] for kw in range(KW)], axis=-1
    ).astype(jnp.bfloat16)

    # im2col weight slab (KH*KW*Cin, Cout_pad), zero-padded on Cout, bf16.
    w_pad = jnp.zeros((KH, KW, Cin, cout_pad), jnp.float32)
    w_pad = w_pad.at[..., :Cout].set(w_hwio.astype(jnp.float32))
    w_slab = w_pad.reshape(KH * KW * Cin, cout_pad).astype(jnp.bfloat16)

    scale_p = jnp.zeros((1, cout_pad), jnp.float32).at[0, :Cout].set(
        scale.astype(jnp.float32))
    bias_p = jnp.zeros((1, cout_pad), jnp.float32).at[0, :Cout].set(
        bias.astype(jnp.float32))

    # Batch block: keep M = NB*H*W around `target_rows` rows per Cout-128 tile
    # (bounded f32 accumulator) while amortizing per-grid-step overhead when
    # images are small.
    nb = max(1, min(N, target_rows // max(H * W, 1)))
    while N % nb:
        nb -= 1

    hp = H + 2 * ph
    kwc = KW * Cin

    out_nhwc = pl.pallas_call(
        conv_bn_relu_kernel,
        out_shape=jax.ShapeDtypeStruct((N, H, W, cout_pad), jnp.float32),
        grid=(N // nb, cout_pad // cout_tile),
        in_specs=[
            pl.BlockSpec((nb, hp, W, kwc), lambda b, co: (b, 0, 0, 0)),
            pl.BlockSpec((KH * KW * Cin, cout_tile), lambda b, co: (0, co)),
            pl.BlockSpec((1, cout_tile), lambda b, co: (0, co)),
            pl.BlockSpec((1, cout_tile), lambda b, co: (0, co)),
        ],
        out_specs=pl.BlockSpec((nb, H, W, cout_tile),
                               lambda b, co: (b, 0, 0, co)),
        compiler_params=pltpu.CompilerParams(
            dimension_semantics=("parallel", "parallel"),
            vmem_limit_bytes=32 * 1024 * 1024),
    )(x_kw, w_slab, scale_p, bias_p)

    # Drop the padded channels and return NCHW to match the PyTorch module.
    return jnp.transpose(out_nhwc[..., :Cout], (0, 3, 1, 2))


def reference(x_nchw, w_hwio, scale, bias):
    """Pure-JAX reference: conv2d ('same') + folded eval-BN + ReLU, in NCHW."""
    w_oihw = jnp.transpose(w_hwio, (3, 2, 0, 1))
    y = jax.lax.conv_general_dilated(
        x_nchw, w_oihw, window_strides=(1, 1), padding="SAME",
        dimension_numbers=("NCHW", "OIHW", "NCHW"))
    y = y * scale[None, :, None, None] + bias[None, :, None, None]
    return jnp.maximum(y, 0.0)


if __name__ == "__main__":
    N, Cin, Cout, H, W = 2, 4, 8, 16, 16
    KH = KW = 3

    key = jax.random.PRNGKey(0)
    kx, kwt, kg, kb, km, kv = jax.random.split(key, 6)

    x = jax.random.normal(kx, (N, Cin, H, W), jnp.float32)
    w = jax.random.normal(kwt, (KH, KW, Cin, Cout), jnp.float32) * 0.1

    # Deterministic synthetic BatchNorm2d parameters (eval mode).
    eps = 1e-5
    gamma = 1.0 + 0.1 * jax.random.normal(kg, (Cout,), jnp.float32)
    beta = 0.1 * jax.random.normal(kb, (Cout,), jnp.float32)
    running_mean = 0.1 * jax.random.normal(km, (Cout,), jnp.float32)
    running_var = jnp.abs(1.0 + 0.1 * jax.random.normal(kv, (Cout,), jnp.float32))

    scale = gamma / jnp.sqrt(running_var + eps)
    bias = beta - running_mean * scale

    out = jax.block_until_ready(conv_bn_relu(x, w, scale, bias))
    ref = jax.block_until_ready(reference(x, w, scale, bias))

    assert out.shape == (N, Cout, H, W)
    # bf16 matmul operands (f32 accumulation) -> loosened tolerance vs f32 ref.
    assert jnp.allclose(out, ref, atol=5e-2, rtol=5e-2), "mismatch vs reference"

    print("KERNEL_OK")
</pallas_src>

<mosaic_0001>
module attributes {stable_mosaic.version = 11 : i64} {
  func.func @conv_bn_relu_kernel(%arg0: i32, %arg1: i32, %arg2: memref<1x18x16x12xbf16, #tpu.memory_space<vmem>>, %arg3: memref<36x128xbf16, #tpu.memory_space<vmem>>, %arg4: memref<1x128xf32, #tpu.memory_space<vmem>>, %arg5: memref<1x128xf32, #tpu.memory_space<vmem>>, %arg6: memref<1x16x16x128xf32, #tpu.memory_space<vmem>>) attributes {dimension_semantics = [#tpu.dimension_semantics<parallel>, #tpu.dimension_semantics<parallel>], iteration_bounds = array<i64: 2, 1>, scalar_prefetch = 0 : i64, scratch_operands = 0 : i64, tpu.core_type = #tpu.core_type<tc>, window_params = [{transform_indices = @transform_0, window_bounds = array<i64: 1, 18, 16, 12>}, {transform_indices = @transform_1, window_bounds = array<i64: 36, 128>}, {transform_indices = @transform_2, window_bounds = array<i64: 1, 128>}, {transform_indices = @transform_3, window_bounds = array<i64: 1, 128>}, {transform_indices = @transform_4, window_bounds = array<i64: 1, 16, 16, 128>}]} {
    %c0 = arith.constant 0 : index
    %c0_0 = arith.constant 0 : index
    %c0_1 = arith.constant 0 : index
    %c0_2 = arith.constant 0 : index
    %0 = vector.load %arg2[%c0, %c0_0, %c0_1, %c0_2] : memref<1x18x16x12xbf16, #tpu.memory_space<vmem>>, vector<1x16x16x12xbf16>
    %1 = vector.shape_cast %0 : vector<1x16x16x12xbf16> to vector<256x12xbf16>
    %c0_3 = arith.constant 0 : index
    %c1 = arith.constant 1 : index
    %c0_4 = arith.constant 0 : index
    %c0_5 = arith.constant 0 : index
    %2 = vector.load %arg2[%c0_3, %c1, %c0_4, %c0_5] : memref<1x18x16x12xbf16, #tpu.memory_space<vmem>>, vector<1x16x16x12xbf16>
    %3 = vector.shape_cast %2 : vector<1x16x16x12xbf16> to vector<256x12xbf16>
    %c0_6 = arith.constant 0 : index
    %c2 = arith.constant 2 : index
    %c0_7 = arith.constant 0 : index
    %c0_8 = arith.constant 0 : index
    %4 = vector.load %arg2[%c0_6, %c2, %c0_7, %c0_8] : memref<1x18x16x12xbf16, #tpu.memory_space<vmem>>, vector<1x16x16x12xbf16>
    %5 = vector.shape_cast %4 : vector<1x16x16x12xbf16> to vector<256x12xbf16>
    %6 = tpu.concatenate %1, %3, %5 in 1 : vector<256x12xbf16>, vector<256x12xbf16>, vector<256x12xbf16> -> vector<256x36xbf16>
    %c0_9 = arith.constant 0 : index
    %c0_10 = arith.constant 0 : index
    %7 = vector.load %arg3[%c0_9, %c0_10] : memref<36x128xbf16, #tpu.memory_space<vmem>>, vector<36x128xbf16>
    %cst = arith.constant dense<0.000000e+00> : vector<256x128xf32>
    %8 = tpu.matmul %6, %7, %cst {dimension_numbers = #tpu.dot_dimension_numbers<[1], [0], [0], [1], [0, 0, 1, 1], [], []>} : vector<256x36xbf16>, vector<36x128xbf16>, vector<256x128xf32> -> vector<256x128xf32>
    %c0_11 = arith.constant 0 : index
    %c0_12 = arith.constant 0 : index
    %9 = vector.load %arg4[%c0_11, %c0_12] : memref<1x128xf32, #tpu.memory_space<vmem>>, vector<1x128xf32>
    %10 = vector.shape_cast %9 : vector<1x128xf32> to vector<128xf32>
    %11 = vector.shape_cast %10 : vector<128xf32> to vector<1x128xf32>
    %12 = vector.broadcast %11 : vector<1x128xf32> to vector<256x128xf32>
    %13 = arith.mulf %8, %12 : vector<256x128xf32>
    %c0_13 = arith.constant 0 : index
    %c0_14 = arith.constant 0 : index
    %14 = vector.load %arg5[%c0_13, %c0_14] : memref<1x128xf32, #tpu.memory_space<vmem>>, vector<1x128xf32>
    %15 = vector.shape_cast %14 : vector<1x128xf32> to vector<128xf32>
    %16 = vector.shape_cast %15 : vector<128xf32> to vector<1x128xf32>
    %17 = vector.broadcast %16 : vector<1x128xf32> to vector<256x128xf32>
    %18 = arith.addf %13, %17 : vector<256x128xf32>
    %cst_15 = arith.constant 0.000000e+00 : f32
    %19 = vector.broadcast %cst_15 : f32 to vector<256x128xf32>
    %20 = arith.maximumf %18, %19 : vector<256x128xf32>
    %21 = vector.shape_cast %20 : vector<256x128xf32> to vector<1x16x16x128xf32>
    %c0_16 = arith.constant 0 : index
    %c0_17 = arith.constant 0 : index
    %c0_18 = arith.constant 0 : index
    %c0_19 = arith.constant 0 : index
    %22 = vector.load %arg6[%c0_16, %c0_17, %c0_18, %c0_19] : memref<1x16x16x128xf32, #tpu.memory_space<vmem>>, vector<1x16x16x128xf32>
    tpu.vector_store %arg6[%c0_16, %c0_17, %c0_18, %c0_19], %21 {strides = array<i32>} : memref<1x16x16x128xf32, #tpu.memory_space<vmem>>, vector<1x16x16x128xf32>,
    return
  }
  func.func @transform_0(%arg0: i32, %arg1: i32) -> (i32, i32, i32, i32) {
    %c0_i32 = arith.constant 0 : i32
    %c0_i32_0 = arith.constant 0 : i32
    %c0_i32_1 = arith.constant 0 : i32
    %c0_i32_2 = arith.constant 0 : i32
    return %arg0, %c0_i32, %c0_i32_0, %c0_i32_1 : i32, i32, i32, i32
  }
  func.func @transform_1(%arg0: i32, %arg1: i32) -> (i32, i32) {
    %c0_i32 = arith.constant 0 : i32
    %c0_i32_0 = arith.constant 0 : i32
    return %c0_i32, %arg1 : i32, i32
  }
  func.func @transform_2(%arg0: i32, %arg1: i32) -> (i32, i32) {
    %c0_i32 = arith.constant 0 : i32
    %c0_i32_0 = arith.constant 0 : i32
    return %c0_i32, %arg1 : i32, i32
  }
  func.func @transform_3(%arg0: i32, %arg1: i32) -> (i32, i32) {
    %c0_i32 = arith.constant 0 : i32
    %c0_i32_0 = arith.constant 0 : i32
    return %c0_i32, %arg1 : i32, i32
  }
  func.func @transform_4(%arg0: i32, %arg1: i32) -> (i32, i32, i32, i32) {
    %c0_i32 = arith.constant 0 : i32
    %c0_i32_0 = arith.constant 0 : i32
    %c0_i32_1 = arith.constant 0 : i32
    return %arg0, %c0_i32, %c0_i32_0, %arg1 : i32, i32, i32, i32
  }
}

</mosaic_0001>

<llo_original>
// kernel: tpu_custom_call.1
$region0: #{tpu_custom_call.1}
  #allocation0 [shape = 'u32[]', space=smem, size = 0x4, offset = 0x4, fixed_abs, tag = 'smem constant byte address 0x4 - core index']
  #allocation1 [shape = 'u32[144,128]{1,0:T(1,128)}', space=vmem, size = 0x12000, scoped, tag = 'internal scratch']
  %s0 = inlined_call_operand.vmem [shape: bf16[2,18,16,12], index: 0, kind: input, shape index: {}]
  %s1 = inlined_call_operand.vmem [shape: bf16[36,128], index: 1, kind: input, shape index: {}]
  %s2 = inlined_call_operand.vmem [shape: f32[1,128], index: 2, kind: input, shape index: {}]
  %s3 = inlined_call_operand.vmem [shape: f32[1,128], index: 3, kind: input, shape index: {}]
  %s4 = inlined_call_operand.hbm [shape: f32[2,16,16,128], index: 4, kind: output, shape index: {}]
  %s5 = sld [smem:[#allocation0]]
  $region49: #{tpu_custom_call.1} parent=0
    _
  %s7 = ssub.s32 1, %s5
  %s8 = scalar_select 0, %s7, %s5
  $region1: #{tpu_custom_call.1} parent=0
    #allocation2 [shape = 'u8[262144]{0}', space=vmem, size = 0x40000, scoped, tag = 'output window, operand 0']
    #allocation3 [shape = 's32[2]{0}', space=sflag, size = 0x8, scoped, tag = 'scoped memory for tpu_custom_call.1']
    %9 = vsyncpa [#allocation3], 0
    %s10 = scalar_lea.sflag [#allocation3], 1
    %11 = vsyncpa %s10, 0
    loop: start=0, step=1, limit=4
    $region2: #{tpu_custom_call.1} parent=1 // loop_pre_header
      _
    $region3: #{tpu_custom_call.1} parent=1 // loop_header
      %s13 = sphi 0, %s17
      %p14 = scmp.ge.s32.totalorder %s13, 4
      %s20 = sphi 0, %s32
      %s21 = sphi 0, %s28
      %s22 = sphi 0, %s20
      %s23 = sphi 0, %s21
      %s24 = sphi 0, %s22
      %s25 = sphi 0, %s23
      %s35 = sphi 0, %s37
      %s38 = sphi 0, %s35
      %s39 = sphi 0, %s38
      %s55 = sphi 0, %s39
      %s61 = sphi 0, %s63
      %s64 = sphi 0, %s61
      %s65 = sphi 0, %s64
      %s81 = sphi 0, %s65
      %s87 = sphi 0, %s89
      %s90 = sphi 0, %s87
      %s91 = sphi 0, %s90
      %s107 = sphi 0, %s91
      %s113 = sphi 0, %s115
      %s116 = sphi 0, %s113
      %s117 = sphi 0, %s116
      %s133 = sphi 0, %s117
      %s141 = sphi 0, %s143
      %s144 = sphi 0, %s141
      %s145 = sphi 0, %s144
      %s161 = sphi 0, %s145
    $region4: #{tpu_custom_call.1} parent=1 // loop_header_branch
      %16 = sbr.rel (%p14) target = $region8
    $region5: #{tpu_custom_call.1} parent=1 // loop_body
      %s18 = ssub.s32 %s13, 1
      %s19 = ssub.s32 %s13, 2
      %s26 = sadd.s32 1, %s21
      %p27 = scmp.ge.s32.totalorder %s26, 1
      %s28 = scalar_select %p27, 0, %s26
      %s29 = sadd.s32 1, %s20
      %s30 = scalar_select %p27, %s29, %s20
      %p31 = scmp.ge.s32.totalorder %s30, 2
      %s32 = scalar_select %p31, 0, %s30
      %s33 = ssub.s32 %s20, %s32
      %p34 = scmp.eq.s32.totalorder %s33, 0
      %s36 = sadd.s32 %s35, 1
      %s37 = scalar_select %p34, %s35, %s36
      %p40 = pneg %p34
      %p41 = scmp.eq.s32.totalorder %s13, 1
      %p42 = por %p40, %p41
      %p43 = scmp.ne.s32.totalorder %s35, %s38
      %p44 = scmp.eq.s32.totalorder %s13, 0
      %p45 = por %p43, %p44
      %p46 = scmp.ne.s32.totalorder %s35, %s38
      %p47 = scmp.eq.s32.totalorder %s18, 1
      %p48 = por %p46, %p47
      %p49 = scmp.ne.s32.totalorder %s38, %s39
      %p50 = scmp.eq.s32.totalorder %s18, 0
      %p51 = por %p49, %p50
      %p52 = scmp.ne.s32.totalorder %s38, %s39
      %p53 = scmp.eq.s32.totalorder %s19, 1
      %p54 = por %p52, %p53
      %p56 = scmp.ne.s32.totalorder %s39, %s55
      %p57 = scmp.eq.s32.totalorder %s19, 0
      %p58 = por %p56, %p57
      %s59 = ssub.s32 %s21, %s28
      %p60 = scmp.eq.s32.totalorder %s59, 0
      %s62 = sadd.s32 %s61, 1
      %s63 = scalar_select %p60, %s61, %s62
      %p66 = pneg %p60
      %p67 = scmp.eq.s32.totalorder %s13, 1
      %p68 = por %p66, %p67
      %p69 = scmp.ne.s32.totalorder %s61, %s64
      %p70 = scmp.eq.s32.totalorder %s13, 0
      %p71 = por %p69, %p70
      %p72 = scmp.ne.s32.totalorder %s61, %s64
      %p73 = scmp.eq.s32.totalorder %s18, 1
      %p74 = por %p72, %p73
      %p75 = scmp.ne.s32.totalorder %s64, %s65
      %p76 = scmp.eq.s32.totalorder %s18, 0
      %p77 = por %p75, %p76
      %p78 = scmp.ne.s32.totalorder %s64, %s65
      %p79 = scmp.eq.s32.totalorder %s19, 1
      %p80 = por %p78, %p79
      %p82 = scmp.ne.s32.totalorder %s65, %s81
      %p83 = scmp.eq.s32.totalorder %s19, 0
      %p84 = por %p82, %p83
      %s85 = ssub.s32 %s21, %s28
      %p86 = scmp.eq.s32.totalorder %s85, 0
      %s88 = sadd.s32 %s87, 1
      %s89 = scalar_select %p86, %s87, %s88
      %p92 = pneg %p86
      %p93 = scmp.eq.s32.totalorder %s13, 1
      %p94 = por %p92, %p93
      %p95 = scmp.ne.s32.totalorder %s87, %s90
      %p96 = scmp.eq.s32.totalorder %s13, 0
      %p97 = por %p95, %p96
      %p98 = scmp.ne.s32.totalorder %s87, %s90
      %p99 = scmp.eq.s32.totalorder %s18, 1
      %p100 = por %p98, %p99
      %p101 = scmp.ne.s32.totalorder %s90, %s91
      %p102 = scmp.eq.s32.totalorder %s18, 0
      %p103 = por %p101, %p102
      %p104 = scmp.ne.s32.totalorder %s90, %s91
      %p105 = scmp.eq.s32.totalorder %s19, 1
      %p106 = por %p104, %p105
      %p108 = scmp.ne.s32.totalorder %s91, %s107
      %p109 = scmp.eq.s32.totalorder %s19, 0
      %p110 = por %p108, %p109
      %s111 = ssub.s32 %s21, %s28
      %p112 = scmp.eq.s32.totalorder %s111, 0
      %s114 = sadd.s32 %s113, 1
      %s115 = scalar_select %p112, %s113, %s114
      %p118 = pneg %p112
      %p119 = scmp.eq.s32.totalorder %s13, 1
      %p120 = por %p118, %p119
      %p121 = scmp.ne.s32.totalorder %s113, %s116
      %p122 = scmp.eq.s32.totalorder %s13, 0
      %p123 = por %p121, %p122
      %p124 = scmp.ne.s32.totalorder %s113, %s116
      %p125 = scmp.eq.s32.totalorder %s18, 1
      %p126 = por %p124, %p125
      %p127 = scmp.ne.s32.totalorder %s116, %s117
      %p128 = scmp.eq.s32.totalorder %s18, 0
      %p129 = por %p127, %p128
      %p130 = scmp.ne.s32.totalorder %s116, %s117
      %p131 = scmp.eq.s32.totalorder %s19, 1
      %p132 = por %p130, %p131
      %p134 = scmp.ne.s32.totalorder %s117, %s133
      %p135 = scmp.eq.s32.totalorder %s19, 0
      %p136 = por %p134, %p135
      %s137 = ssub.s32 %s20, %s32
      %s138 = ssub.s32 %s21, %s28
      %s139 = sor.u32 %s137, %s138
      %p140 = scmp.eq.s32.totalorder %s139, 0
      %s142 = sadd.s32 %s141, 1
      %s143 = scalar_select %p140, %s141, %s142
      %p146 = pneg %p140
      %p147 = scmp.eq.s32.totalorder %s13, 1
      %p148 = por %p146, %p147
      %p149 = scmp.ne.s32.totalorder %s141, %s144
      %p150 = scmp.eq.s32.totalorder %s13, 0
      %p151 = por %p149, %p150
      %p152 = scmp.ne.s32.totalorder %s141, %s144
      %p153 = scmp.eq.s32.totalorder %s18, 1
      %p154 = por %p152, %p153
      %p155 = scmp.ne.s32.totalorder %s144, %s145
      %p156 = scmp.eq.s32.totalorder %s18, 0
      %p157 = por %p155, %p156
      %p158 = scmp.ne.s32.totalorder %s144, %s145
      %p159 = scmp.eq.s32.totalorder %s19, 1
      %p160 = por %p158, %p159
      %p162 = scmp.ne.s32.totalorder %s145, %s161
      %p163 = scmp.eq.s32.totalorder %s19, 0
      %p164 = por %p162, %p163
      %p165 = scmp.le.s32.totalorder 1, %s13
      %p166 = scmp.lt.s32.totalorder %s13, 3
      %p167 = pnand %p165, %p166
      %p168 = pneg %p167
      // Predicated region
      $region9: #{tpu_custom_call.1} parent=5 // pred_check
        _
      $region10: #{tpu_custom_call.1} parent=5 // pred_check_branch
        %170 = sbr.rel (%p167) target = $region12
      $region11: #{tpu_custom_call.1} parent=5 // pred_region
        %s171 = ssub.s32 %s13, 1
        // Predicated region
        $region13: #{tpu_custom_call.1} parent=11 // pred_check
          %p172 = pneg %p77
        $region14: #{tpu_custom_call.1} parent=11 // pred_check_branch
          %174 = sbr.rel (%p172) target = $region16
        $region15: #{tpu_custom_call.1} parent=11 // pred_region
          %p175 = scmp.lt.s32.totalorder %s23, 0
          %s176 = scalar_select %p175, %s23, 0
          %s177 = smul.addr %s176, 4
          %s178 = scalar_lea.vmem %s1, %s177
        $region16: #{tpu_custom_call.1} parent=11 // pred_fallthru
          _
        // Predicated region
        $region17: #{tpu_custom_call.1} parent=11 // pred_check
          %p179 = pneg %p103
        $region18: #{tpu_custom_call.1} parent=11 // pred_check_branch
          %181 = sbr.rel (%p179) target = $region20
        $region19: #{tpu_custom_call.1} parent=11 // pred_region
          %p182 = scmp.lt.s32.totalorder %s23, 0
          %s183 = scalar_select %p182, %s23, 0
          %s184 = scalar_lea.vmem %s2, %s183
        $region20: #{tpu_custom_call.1} parent=11 // pred_fallthru
          _
        // Predicated region
        $region21: #{tpu_custom_call.1} parent=11 // pred_check
          %p185 = pneg %p129
        $region22: #{tpu_custom_call.1} parent=11 // pred_check_branch
          %187 = sbr.rel (%p185) target = $region24
        $region23: #{tpu_custom_call.1} parent=11 // pred_region
          %p188 = scmp.lt.s32.totalorder %s23, 0
          %s189 = scalar_select %p188, %s23, 0
          %s190 = scalar_lea.vmem %s3, %s189
        $region24: #{tpu_custom_call.1} parent=11 // pred_fallthru
          _
      $region12: #{tpu_custom_call.1} parent=5 // pred_fallthru
        _
      %p191 = scmp.lt.s32.totalorder %s13, 2
      // Predicated region
      $region25: #{tpu_custom_call.1} parent=5 // pred_check
        %p192 = pneg %p191
      $region26: #{tpu_custom_call.1} parent=5 // pred_check_branch
        %194 = sbr.rel (%p192) target = $region28
      $region27: #{tpu_custom_call.1} parent=5 // pred_region
        // Predicated region
        $region29: #{tpu_custom_call.1} parent=27 // pred_check
          %p195 = pneg %p45
        $region30: #{tpu_custom_call.1} parent=27 // pred_check_branch
          %197 = sbr.rel (%p195) target = $region32
        $region31: #{tpu_custom_call.1} parent=27 // pred_region
          %p198 = scmp.lt.s32.totalorder %s20, 1
          %s199 = scalar_select %p198, %s20, 1
          %s200 = smul.addr %s199, 36
          %s201 = smul.addr %s200, 4
          %s202 = scalar_lea.vmem %s0, %s201
        $region32: #{tpu_custom_call.1} parent=27 // pred_fallthru
          _
      $region28: #{tpu_custom_call.1} parent=5 // pred_fallthru
        _
      %p203 = scmp.le.s32.totalorder 1, %s13
      %p204 = scmp.lt.s32.totalorder %s13, 3
      %p205 = pnand %p203, %p204
      %p206 = pneg %p205
      // Predicated region
      $region33: #{tpu_custom_call.1} parent=5 // pred_check
        _
      $region34: #{tpu_custom_call.1} parent=5 // pred_check_branch
        %208 = sbr.rel (%p205) target = $region36
      $region35: #{tpu_custom_call.1} parent=5 // pred_region
        %s209 = ssub.s32 %s13, 1
        %p210 = scmp.lt.s32.totalorder %s22, 1
        %s211 = scalar_select %p210, %s22, 1
        %s212 = smul.addr %s211, 36
        %s213 = smul.addr %s212, 4
        %s214 = scalar_lea.vmem %s0, %s213
        %p215 = pneg %p51
        %p216 = pneg %p48
        %p217 = scmp.lt.s32.totalorder %s23, 0
        %s218 = scalar_select %p217, %s23, 0
        %s219 = smul.addr %s218, 4
        %s220 = scalar_lea.vmem %s1, %s219
        %p221 = pneg %p77
        %p222 = pneg %p74
        %p223 = scmp.lt.s32.totalorder %s23, 0
        %s224 = scalar_select %p223, %s23, 0
        %s225 = scalar_lea.vmem %s2, %s224
        %p226 = pneg %p103
        %p227 = pneg %p100
        %p228 = scmp.lt.s32.totalorder %s23, 0
        %s229 = scalar_select %p228, %s23, 0
        %s230 = scalar_lea.vmem %s3, %s229
        %p231 = pneg %p129
        %p232 = pneg %p126
        %p233 = pneg %p157
        %p234 = pneg %p154
        %s235 = sand.u32 %s144, 1
        %s236 = scalar_lea.sflag [#allocation3], %s235
        %s237 = sand.u32 %s144, 1
        %s238 = smul.addr %s237, 256
        %s239 = scalar_lea.vmem [#allocation2], %s238
        %p240 = scmp.lt.s32.totalorder %s22, 1
        %s241 = scalar_select %p240, %s22, 1
        %s242 = smul.addr %s241, 36
        %s243 = smul.addr %s242, 4
        %s244 = scalar_lea.vmem %s0, %s243
        %p245 = scmp.lt.s32.totalorder %s23, 0
        %s246 = scalar_select %p245, %s23, 0
        %s247 = smul.addr %s246, 4
        %s248 = scalar_lea.vmem %s1, %s247
        %p249 = scmp.lt.s32.totalorder %s23, 0
        %s250 = scalar_select %p249, %s23, 0
        %s251 = scalar_lea.vmem %s2, %s250
        %p252 = scmp.lt.s32.totalorder %s23, 0
        %s253 = scalar_select %p252, %s23, 0
        %s254 = scalar_lea.vmem %s3, %s253
        %v256 = vld [vmem:[%s244] sm:$0xf]
        %v257 = vld [vmem:[%s244 + $0x4] sm:$0xf]
        %v258 = vld [vmem:[%s244 + $0x8] sm:$0xf]
        %v259 = vld [vmem:[%s244 + $0xc] sm:$0xf]
        %v260 = vld [vmem:[%s244 + $0x10] sm:$0xf]
        %v261 = vld [vmem:[%s244 + $0x14] sm:$0xf]
        %v262 = vld [vmem:[%s244 + $0x18] sm:$0xf]
        %v263 = vld [vmem:[%s244 + $0x1c] sm:$0xf]
        %v264 = vld [vmem:[%s244 + $0x20] sm:$0xf]
        %v265 = vld [vmem:[%s244 + $0x24] sm:$0xf]
        %v266 = vld [vmem:[%s244 + $0x28] sm:$0xf]
        %v267 = vld [vmem:[%s244 + $0x2c] sm:$0xf]
        %v268 = vld [vmem:[%s244 + $0x30] sm:$0xf]
        %v269 = vld [vmem:[%s244 + $0x34] sm:$0xf]
        %v270 = vld [vmem:[%s244 + $0x38] sm:$0xf]
        %v271 = vld [vmem:[%s244 + $0x3c] sm:$0xf]
        %v272 = vld [vmem:[%s244 + $0x40] sm:$0xf]
        %v273 = vld [vmem:[%s244 + $0x44] sm:$0xf]
        %v274 = vld [vmem:[%s244 + $0x48] sm:$0xf]
        %v275 = vld [vmem:[%s244 + $0x4c] sm:$0xf]
        %v276 = vld [vmem:[%s244 + $0x50] sm:$0xf]
        %v277 = vld [vmem:[%s244 + $0x54] sm:$0xf]
        %v278 = vld [vmem:[%s244 + $0x58] sm:$0xf]
        %v279 = vld [vmem:[%s244 + $0x5c] sm:$0xf]
        %v280 = vld [vmem:[%s244 + $0x60] sm:$0xf]
        %v281 = vld [vmem:[%s244 + $0x64] sm:$0xf]
        %v282 = vld [vmem:[%s244 + $0x68] sm:$0xf]
        %v283 = vld [vmem:[%s244 + $0x6c] sm:$0xf]
        %v284 = vld [vmem:[%s244 + $0x70] sm:$0xf]
        %v285 = vld [vmem:[%s244 + $0x74] sm:$0xf]
        %v286 = vld [vmem:[%s244 + $0x78] sm:$0xf]
        %v287 = vld [vmem:[%s244 + $0x7c] sm:$0xf]
        %s288 = scalar_lea.vmem %s244, 8
        %v289 = vld [vmem:[%s288] sm:$0xf]
        %v290 = vld [vmem:[%s288 + $0x4] sm:$0xf]
        %v291 = vld [vmem:[%s288 + $0x8] sm:$0xf]
        %v292 = vld [vmem:[%s288 + $0xc] sm:$0xf]
        %v293 = vld [vmem:[%s288 + $0x10] sm:$0xf]
        %v294 = vld [vmem:[%s288 + $0x14] sm:$0xf]
        %v295 = vld [vmem:[%s288 + $0x18] sm:$0xf]
        %v296 = vld [vmem:[%s288 + $0x1c] sm:$0xf]
        %v297 = vld [vmem:[%s288 + $0x20] sm:$0xf]
        %v298 = vld [vmem:[%s288 + $0x24] sm:$0xf]
        %v299 = vld [vmem:[%s288 + $0x28] sm:$0xf]
        %v300 = vld [vmem:[%s288 + $0x2c] sm:$0xf]
        %v301 = vld [vmem:[%s288 + $0x30] sm:$0xf]
        %v302 = vld [vmem:[%s288 + $0x34] sm:$0xf]
        %v303 = vld [vmem:[%s288 + $0x38] sm:$0xf]
        %v304 = vld [vmem:[%s288 + $0x3c] sm:$0xf]
        %v305 = vld [vmem:[%s288 + $0x40] sm:$0xf]
        %v306 = vld [vmem:[%s288 + $0x44] sm:$0xf]
        %v307 = vld [vmem:[%s288 + $0x48] sm:$0xf]
        %v308 = vld [vmem:[%s288 + $0x4c] sm:$0xf]
        %v309 = vld [vmem:[%s288 + $0x50] sm:$0xf]
        %v310 = vld [vmem:[%s288 + $0x54] sm:$0xf]
        %v311 = vld [vmem:[%s288 + $0x58] sm:$0xf]
        %v312 = vld [vmem:[%s288 + $0x5c] sm:$0xf]
        %v313 = vld [vmem:[%s288 + $0x60] sm:$0xf]
        %v314 = vld [vmem:[%s288 + $0x64] sm:$0xf]
        %v315 = vld [vmem:[%s288 + $0x68] sm:$0xf]
        %v316 = vld [vmem:[%s288 + $0x6c] sm:$0xf]
        %v317 = vld [vmem:[%s288 + $0x70] sm:$0xf]
        %v318 = vld [vmem:[%s288 + $0x74] sm:$0xf]
        %v319 = vld [vmem:[%s288 + $0x78] sm:$0xf]
        %v320 = vld [vmem:[%s288 + $0x7c] sm:$0xf]
        %s321 = scalar_lea.vmem %s244, 16
        %v322 = vld [vmem:[%s321] sm:$0xf]
        %v323 = vld [vmem:[%s321 + $0x4] sm:$0xf]
        %v324 = vld [vmem:[%s321 + $0x8] sm:$0xf]
        %v325 = vld [vmem:[%s321 + $0xc] sm:$0xf]
        %v326 = vld [vmem:[%s321 + $0x10] sm:$0xf]
        %v327 = vld [vmem:[%s321 + $0x14] sm:$0xf]
        %v328 = vld [vmem:[%s321 + $0x18] sm:$0xf]
        %v329 = vld [vmem:[%s321 + $0x1c] sm:$0xf]
        %v330 = vld [vmem:[%s321 + $0x20] sm:$0xf]
        %v331 = vld [vmem:[%s321 + $0x24] sm:$0xf]
        %v332 = vld [vmem:[%s321 + $0x28] sm:$0xf]
        %v333 = vld [vmem:[%s321 + $0x2c] sm:$0xf]
        %v334 = vld [vmem:[%s321 + $0x30] sm:$0xf]
        %v335 = vld [vmem:[%s321 + $0x34] sm:$0xf]
        %v336 = vld [vmem:[%s321 + $0x38] sm:$0xf]
        %v337 = vld [vmem:[%s321 + $0x3c] sm:$0xf]
        %v338 = vld [vmem:[%s321 + $0x40] sm:$0xf]
        %v339 = vld [vmem:[%s321 + $0x44] sm:$0xf]
        %v340 = vld [vmem:[%s321 + $0x48] sm:$0xf]
        %v341 = vld [vmem:[%s321 + $0x4c] sm:$0xf]
        %v342 = vld [vmem:[%s321 + $0x50] sm:$0xf]
        %v343 = vld [vmem:[%s321 + $0x54] sm:$0xf]
        %v344 = vld [vmem:[%s321 + $0x58] sm:$0xf]
        %v345 = vld [vmem:[%s321 + $0x5c] sm:$0xf]
        %v346 = vld [vmem:[%s321 + $0x60] sm:$0xf]
        %v347 = vld [vmem:[%s321 + $0x64] sm:$0xf]
        %v348 = vld [vmem:[%s321 + $0x68] sm:$0xf]
        %v349 = vld [vmem:[%s321 + $0x6c] sm:$0xf]
        %v350 = vld [vmem:[%s321 + $0x70] sm:$0xf]
        %v351 = vld [vmem:[%s321 + $0x74] sm:$0xf]
        %v352 = vld [vmem:[%s321 + $0x78] sm:$0xf]
        %v353 = vld [vmem:[%s321 + $0x7c] sm:$0xf]
        %v386 = vunpack.c.l.b16 %v256
        %v387 = vunpack.c.l.b16 %v257
        %v388 = vunpack.c.l.b16 %v258
        %v389 = vunpack.c.l.b16 %v259
        %v390 = vunpack.c.l.b16 %v260
        %v391 = vunpack.c.l.b16 %v261
        %v392 = vunpack.c.l.b16 %v262
        %v393 = vunpack.c.l.b16 %v263
        %v394 = vunpack.c.l.b16 %v264
        %v395 = vunpack.c.l.b16 %v265
        %v396 = vunpack.c.l.b16 %v266
        %v397 = vunpack.c.l.b16 %v267
        %v398 = vunpack.c.l.b16 %v268
        %v399 = vunpack.c.l.b16 %v269
        %v400 = vunpack.c.l.b16 %v270
        %v401 = vunpack.c.l.b16 %v271
        %v402 = vunpack.c.l.b16 %v272
        %v403 = vunpack.c.l.b16 %v273
        %v404 = vunpack.c.l.b16 %v274
        %v405 = vunpack.c.l.b16 %v275
        %v406 = vunpack.c.l.b16 %v276
        %v407 = vunpack.c.l.b16 %v277
        %v408 = vunpack.c.l.b16 %v278
        %v409 = vunpack.c.l.b16 %v279
        %v410 = vunpack.c.l.b16 %v280
        %v411 = vunpack.c.l.b16 %v281
        %v412 = vunpack.c.l.b16 %v282
        %v413 = vunpack.c.l.b16 %v283
        %v414 = vunpack.c.l.b16 %v284
        %v415 = vunpack.c.l.b16 %v285
        %v416 = vunpack.c.l.b16 %v286
        %v417 = vunpack.c.l.b16 %v287
        %v418 = vpack.c.b16 %v387, %v386
        %v419 = vpack.c.b16 %v389, %v388
        %v420 = vpack.c.b16 %v391, %v390
        %v421 = vpack.c.b16 %v393, %v392
        %v422 = vpack.c.b16 %v395, %v394
        %v423 = vpack.c.b16 %v397, %v396
        %v424 = vpack.c.b16 %v399, %v398
        %v425 = vpack.c.b16 %v401, %v400
        %v426 = vpack.c.b16 %v403, %v402
        %v427 = vpack.c.b16 %v405, %v404
        %v428 = vpack.c.b16 %v407, %v406
        %v429 = vpack.c.b16 %v409, %v408
        %v430 = vpack.c.b16 %v411, %v410
        %v431 = vpack.c.b16 %v413, %v412
        %v432 = vpack.c.b16 %v415, %v414
        %v433 = vpack.c.b16 %v417, %v416
        %v466 = vunpack.c.l.b16 %v289
        %v467 = vunpack.c.l.b16 %v290
        %v468 = vunpack.c.l.b16 %v291
        %v469 = vunpack.c.l.b16 %v292
        %v470 = vunpack.c.l.b16 %v293
        %v471 = vunpack.c.l.b16 %v294
        %v472 = vunpack.c.l.b16 %v295
        %v473 = vunpack.c.l.b16 %v296
        %v474 = vunpack.c.l.b16 %v297
        %v475 = vunpack.c.l.b16 %v298
        %v476 = vunpack.c.l.b16 %v299
        %v477 = vunpack.c.l.b16 %v300
        %v478 = vunpack.c.l.b16 %v301
        %v479 = vunpack.c.l.b16 %v302
        %v480 = vunpack.c.l.b16 %v303
        %v481 = vunpack.c.l.b16 %v304
        %v482 = vunpack.c.l.b16 %v305
        %v483 = vunpack.c.l.b16 %v306
        %v484 = vunpack.c.l.b16 %v307
        %v485 = vunpack.c.l.b16 %v308
        %v486 = vunpack.c.l.b16 %v309
        %v487 = vunpack.c.l.b16 %v310
        %v488 = vunpack.c.l.b16 %v311
        %v489 = vunpack.c.l.b16 %v312
        %v490 = vunpack.c.l.b16 %v313
        %v491 = vunpack.c.l.b16 %v314
        %v492 = vunpack.c.l.b16 %v315
        %v493 = vunpack.c.l.b16 %v316
        %v494 = vunpack.c.l.b16 %v317
        %v495 = vunpack.c.l.b16 %v318
        %v496 = vunpack.c.l.b16 %v319
        %v497 = vunpack.c.l.b16 %v320
        %v498 = vpack.c.b16 %v467, %v466
        %v499 = vpack.c.b16 %v469, %v468
        %v500 = vpack.c.b16 %v471, %v470
        %v501 = vpack.c.b16 %v473, %v472
        %v502 = vpack.c.b16 %v475, %v474
        %v503 = vpack.c.b16 %v477, %v476
        %v504 = vpack.c.b16 %v479, %v478
        %v505 = vpack.c.b16 %v481, %v480
        %v506 = vpack.c.b16 %v483, %v482
        %v507 = vpack.c.b16 %v485, %v484
        %v508 = vpack.c.b16 %v487, %v486
        %v509 = vpack.c.b16 %v489, %v488
        %v510 = vpack.c.b16 %v491, %v490
        %v511 = vpack.c.b16 %v493, %v492
        %v512 = vpack.c.b16 %v495, %v494
        %v513 = vpack.c.b16 %v497, %v496
        %514 = vrot.lane.b32.xlu0 %v498, 12
        %v515 = vpop.permute.xlu0 %514
        %516 = vrot.lane.b32.xlu0 %v499, 12
        %v517 = vpop.permute.xlu0 %516
        %518 = vrot.lane.b32.xlu0 %v500, 12
        %v519 = vpop.permute.xlu0 %518
        %520 = vrot.lane.b32.xlu0 %v501, 12
        %v521 = vpop.permute.xlu0 %520
        %522 = vrot.lane.b32.xlu0 %v502, 12
        %v523 = vpop.permute.xlu0 %522
        %524 = vrot.lane.b32.xlu0 %v503, 12
        %v525 = vpop.permute.xlu0 %524
        %526 = vrot.lane.b32.xlu0 %v504, 12
        %v527 = vpop.permute.xlu0 %526
        %528 = vrot.lane.b32.xlu0 %v505, 12
        %v529 = vpop.permute.xlu0 %528
        %530 = vrot.lane.b32.xlu0 %v506, 12
        %v531 = vpop.permute.xlu0 %530
        %532 = vrot.lane.b32.xlu0 %v507, 12
        %v533 = vpop.permute.xlu0 %532
        %534 = vrot.lane.b32.xlu0 %v508, 12
        %v535 = vpop.permute.xlu0 %534
        %536 = vrot.lane.b32.xlu0 %v509, 12
        %v537 = vpop.permute.xlu0 %536
        %538 = vrot.lane.b32.xlu0 %v510, 12
        %v539 = vpop.permute.xlu0 %538
        %540 = vrot.lane.b32.xlu0 %v511, 12
        %v541 = vpop.permute.xlu0 %540
        %542 = vrot.lane.b32.xlu0 %v512, 12
        %v543 = vpop.permute.xlu0 %542
        %544 = vrot.lane.b32.xlu0 %v513, 12
        %v545 = vpop.permute.xlu0 %544
        %v578 = vunpack.c.l.b16 %v322
        %v579 = vunpack.c.l.b16 %v323
        %v580 = vunpack.c.l.b16 %v324
        %v581 = vunpack.c.l.b16 %v325
        %v582 = vunpack.c.l.b16 %v326
        %v583 = vunpack.c.l.b16 %v327
        %v584 = vunpack.c.l.b16 %v328
        %v585 = vunpack.c.l.b16 %v329
        %v586 = vunpack.c.l.b16 %v330
        %v587 = vunpack.c.l.b16 %v331
        %v588 = vunpack.c.l.b16 %v332
        %v589 = vunpack.c.l.b16 %v333
        %v590 = vunpack.c.l.b16 %v334
        %v591 = vunpack.c.l.b16 %v335
        %v592 = vunpack.c.l.b16 %v336
        %v593 = vunpack.c.l.b16 %v337
        %v594 = vunpack.c.l.b16 %v338
        %v595 = vunpack.c.l.b16 %v339
        %v596 = vunpack.c.l.b16 %v340
        %v597 = vunpack.c.l.b16 %v341
        %v598 = vunpack.c.l.b16 %v342
        %v599 = vunpack.c.l.b16 %v343
        %v600 = vunpack.c.l.b16 %v344
        %v601 = vunpack.c.l.b16 %v345
        %v602 = vunpack.c.l.b16 %v346
        %v603 = vunpack.c.l.b16 %v347
        %v604 = vunpack.c.l.b16 %v348
        %v605 = vunpack.c.l.b16 %v349
        %v606 = vunpack.c.l.b16 %v350
        %v607 = vunpack.c.l.b16 %v351
        %v608 = vunpack.c.l.b16 %v352
        %v609 = vunpack.c.l.b16 %v353
        %v610 = vpack.c.b16 %v579, %v578
        %v611 = vpack.c.b16 %v581, %v580
        %v612 = vpack.c.b16 %v583, %v582
        %v613 = vpack.c.b16 %v585, %v584
        %v614 = vpack.c.b16 %v587, %v586
        %v615 = vpack.c.b16 %v589, %v588
        %v616 = vpack.c.b16 %v591, %v590
        %v617 = vpack.c.b16 %v593, %v592
        %v618 = vpack.c.b16 %v595, %v594
        %v619 = vpack.c.b16 %v597, %v596
        %v620 = vpack.c.b16 %v599, %v598
        %v621 = vpack.c.b16 %v601, %v600
        %v622 = vpack.c.b16 %v603, %v602
        %v623 = vpack.c.b16 %v605, %v604
        %v624 = vpack.c.b16 %v607, %v606
        %v625 = vpack.c.b16 %v609, %v608
        %626 = vrot.lane.b32.xlu0 %v610, 24
        %v627 = vpop.permute.xlu0 %626
        %628 = vrot.lane.b32.xlu0 %v611, 24
        %v629 = vpop.permute.xlu0 %628
        %630 = vrot.lane.b32.xlu0 %v612, 24
        %v631 = vpop.permute.xlu0 %630
        %632 = vrot.lane.b32.xlu0 %v613, 24
        %v633 = vpop.permute.xlu0 %632
        %634 = vrot.lane.b32.xlu0 %v614, 24
        %v635 = vpop.permute.xlu0 %634
        %636 = vrot.lane.b32.xlu0 %v615, 24
        %v637 = vpop.permute.xlu0 %636
        %638 = vrot.lane.b32.xlu0 %v616, 24
        %v639 = vpop.permute.xlu0 %638
        %640 = vrot.lane.b32.xlu0 %v617, 24
        %v641 = vpop.permute.xlu0 %640
        %642 = vrot.lane.b32.xlu0 %v618, 24
        %v643 = vpop.permute.xlu0 %642
        %644 = vrot.lane.b32.xlu0 %v619, 24
        %v645 = vpop.permute.xlu0 %644
        %646 = vrot.lane.b32.xlu0 %v620, 24
        %v647 = vpop.permute.xlu0 %646
        %648 = vrot.lane.b32.xlu0 %v621, 24
        %v649 = vpop.permute.xlu0 %648
        %650 = vrot.lane.b32.xlu0 %v622, 24
        %v651 = vpop.permute.xlu0 %650
        %652 = vrot.lane.b32.xlu0 %v623, 24
        %v653 = vpop.permute.xlu0 %652
        %654 = vrot.lane.b32.xlu0 %v624, 24
        %v655 = vpop.permute.xlu0 %654
        %656 = vrot.lane.b32.xlu0 %v625, 24
        %v657 = vpop.permute.xlu0 %656
        %vm658 = vcmask 97280
        %v661 = vsel %vm658, %v418, %v515
        %v664 = vsel %vm658, %v419, %v517
        %v667 = vsel %vm658, %v420, %v519
        %v670 = vsel %vm658, %v421, %v521
        %v673 = vsel %vm658, %v422, %v523
        %v676 = vsel %vm658, %v423, %v525
        %v679 = vsel %vm658, %v424, %v527
        %v682 = vsel %vm658, %v425, %v529
        %v685 = vsel %vm658, %v426, %v531
        %v688 = vsel %vm658, %v427, %v533
        %v691 = vsel %vm658, %v428, %v535
        %v694 = vsel %vm658, %v429, %v537
        %v697 = vsel %vm658, %v430, %v539
        %v700 = vsel %vm658, %v431, %v541
        %v703 = vsel %vm658, %v432, %v543
        %v706 = vsel %vm658, %v433, %v545
        %vm707 = vcmask 195584
        %v709 = vsel %vm707, %v661, %v627
        %v711 = vsel %vm707, %v664, %v629
        %v713 = vsel %vm707, %v667, %v631
        %v715 = vsel %vm707, %v670, %v633
        %v717 = vsel %vm707, %v673, %v635
        %v719 = vsel %vm707, %v676, %v637
        %v721 = vsel %vm707, %v679, %v639
        %v723 = vsel %vm707, %v682, %v641
        %v725 = vsel %vm707, %v685, %v643
        %v727 = vsel %vm707, %v688, %v645
        %v729 = vsel %vm707, %v691, %v647
        %v731 = vsel %vm707, %v694, %v649
        %v733 = vsel %vm707, %v697, %v651
        %v735 = vsel %vm707, %v700, %v653
        %v737 = vsel %vm707, %v703, %v655
        %v739 = vsel %vm707, %v706, %v657
        %v740 = vld [vmem:[%s248] sm:$0xf]
        %v741 = vld [vmem:[%s248 + $0x4] sm:$0xf]
        %v742 = vld [vmem:[%s248 + $0x8] sm:$0xf]
        %v743 = vld [vmem:[%s248 + $0xc] sm:$0xf]
        %v744 = vld [vmem:[%s248 + $0x10] sm:$0x3]
        %v750 = vunpack.c.l.b16 %v740
        %v751 = vunpack.c.l.b16 %v741
        %v752 = vunpack.c.l.b16 %v742
        %v753 = vunpack.c.l.b16 %v743
        %v754 = vunpack.c.l.b16 %v744
        %v755 = vpack.c.b16 %v751, %v750
        %v756 = vpack.c.b16 %v753, %v752
        %v757 = vpack.c.b16 %v754, %v754
        %vm760 = vcmask 293888
        %v761 = vsel %vm760, %v709, 0
        %v763 = vsel %vm760, %v711, 0
        %v765 = vsel %vm760, %v713, 0
        %v767 = vsel %vm760, %v715, 0
        %v769 = vsel %vm760, %v717, 0
        %v771 = vsel %vm760, %v719, 0
        %v773 = vsel %vm760, %v721, 0
        %v775 = vsel %vm760, %v723, 0
        %v777 = vsel %vm760, %v725, 0
        %v779 = vsel %vm760, %v727, 0
        %v781 = vsel %vm760, %v729, 0
        %v783 = vsel %vm760, %v731, 0
        %v785 = vsel %vm760, %v733, 0
        %v787 = vsel %vm760, %v735, 0
        %v789 = vsel %vm760, %v737, 0
        %v791 = vsel %vm760, %v739, 0
        %vm793 = vcmask 1041408
        %v795 = vsel %vm793, %v757, 0
        %797 = vmatprep.subr.bf16.mxu0 0
        %798 = vmatpush1.bf16.msra.mxu0 %v755
        %799 = vmatprep.subr.bf16.mxu0 0
        %800 = vmatpush1.bf16.msra.mxu0 %v756
        %801 = vmatprep.subr.bf16.mxu0 0
        %802 = vmatpush1.bf16.msra.mxu0 %v795
        %803 = vmatprep.subr.bf16.mxu0 0
        %804 = vmatpush1.bf16.msra.mxu0 0
        %805 = vmatprep.subr.bf16.mxu0 0
        %806 = vmatpush1.bf16.msra.mxu0 0
        %807 = vmatprep.subr.bf16.mxu0 0
        %808 = vmatpush1.bf16.msra.mxu0 0
        %809 = vmatprep.subr.bf16.mxu0 0
        %810 = vmatpush1.bf16.msra.mxu0 0
        %811 = vmatprep.subr.bf16.mxu0 0
        %812 = vmatpush1.bf16.msra.mxu0 0
        %813 = vmatprep.subr.bf16.mxu0 0
        %814 = vmatpush1.bf16.msra.mxu0 0
        %815 = vmatprep.subr.bf16.mxu0 0
        %816 = vmatpush1.bf16.msra.mxu0 0
        %817 = vmatprep.subr.bf16.mxu0 0
        %818 = vmatpush1.bf16.msra.mxu0 0
        %819 = vmatprep.subr.bf16.mxu0 0
        %820 = vmatpush1.bf16.msra.mxu0 0
        %821 = vmatprep.subr.bf16.mxu0 0
        %822 = vmatpush1.bf16.msra.mxu0 0
        %823 = vmatprep.subr.bf16.mxu0 0
        %824 = vmatpush1.bf16.msra.mxu0 0
        %825 = vmatprep.subr.bf16.mxu0 0
        %826 = vmatpush1.bf16.msra.mxu0 0
        %827 = vmatprep.subr.bf16.mxu0 0
        %828 = vmatpush1.bf16.msra.mxu0 0
        %829 = vmatprep.mubr.bf16.mxu0 0
        %830 = vmatmul.mubr.bf16.gmra.mrb[0].mxu0 %v761
        %v831 = vpop.f32.mrb[0].mxu0
        %v832 = vadd.f32 0.0, %v831
        %v833 = vpop.f32.mrb[0].mxu0
        %v834 = vpop.f32.mrb[0].mxu0
        %v835 = vadd.f32 0.0, %v834
        %v836 = vpop.f32.mrb[0].mxu0
        %837 = vmatprep.mubr.bf16.mxu0 0
        %838 = vmatmul.mubr.bf16.gmra.mrb[0].mxu0 %v763
        %v839 = vpop.f32.mrb[0].mxu0
        %v840 = vadd.f32 0.0, %v839
        %v841 = vpop.f32.mrb[0].mxu0
        %v842 = vpop.f32.mrb[0].mxu0
        %v843 = vadd.f32 0.0, %v842
        %v844 = vpop.f32.mrb[0].mxu0
        %845 = vmatprep.mubr.bf16.mxu0 0
        %846 = vmatmul.mubr.bf16.gmra.mrb[0].mxu0 %v765
        %v847 = vpop.f32.mrb[0].mxu0
        %v848 = vadd.f32 0.0, %v847
        %v849 = vpop.f32.mrb[0].mxu0
        %v850 = vpop.f32.mrb[0].mxu0
        %v851 = vadd.f32 0.0, %v850
        %v852 = vpop.f32.mrb[0].mxu0
        %853 = vmatprep.mubr.bf16.mxu0 0
        %854 = vmatmul.mubr.bf16.gmra.mrb[0].mxu0 %v767
        %v855 = vpop.f32.mrb[0].mxu0
        %v856 = vadd.f32 0.0, %v855
        %v857 = vpop.f32.mrb[0].mxu0
        %v858 = vpop.f32.mrb[0].mxu0
        %v859 = vadd.f32 0.0, %v858
        %v860 = vpop.f32.mrb[0].mxu0
        %861 = vmatprep.mubr.bf16.mxu0 0
        %862 = vmatmul.mubr.bf16.gmra.mrb[0].mxu0 %v769
        %v863 = vpop.f32.mrb[0].mxu0
        %v864 = vadd.f32 0.0, %v863
        %v865 = vpop.f32.mrb[0].mxu0
        %v866 = vpop.f32.mrb[0].mxu0
        %v867 = vadd.f32 0.0, %v866
        %v868 = vpop.f32.mrb[0].mxu0
        %869 = vmatprep.mubr.bf16.mxu0 0
        %870 = vmatmul.mubr.bf16.gmra.mrb[0].mxu0 %v771
        %v871 = vpop.f32.mrb[0].mxu0
        %v872 = vadd.f32 0.0, %v871
        %v873 = vpop.f32.mrb[0].mxu0
        %v874 = vpop.f32.mrb[0].mxu0
        %v875 = vadd.f32 0.0, %v874
        %v876 = vpop.f32.mrb[0].mxu0
        %877 = vmatprep.mubr.bf16.mxu0 0
        %878 = vmatmul.mubr.bf16.gmra.mrb[0].mxu0 %v773
        %v879 = vpop.f32.mrb[0].mxu0
        %v880 = vadd.f32 0.0, %v879
        %v881 = vpop.f32.mrb[0].mxu0
        %v882 = vpop.f32.mrb[0].mxu0
        %v883 = vadd.f32 0.0, %v882
        %v884 = vpop.f32.mrb[0].mxu0
        %885 = vmatprep.mubr.bf16.mxu0 0
        %886 = vmatmul.mubr.bf16.gmra.mrb[0].mxu0 %v775
        %v887 = vpop.f32.mrb[0].mxu0
        %v888 = vadd.f32 0.0, %v887
        %v889 = vpop.f32.mrb[0].mxu0
        %v890 = vpop.f32.mrb[0].mxu0
        %v891 = vadd.f32 0.0, %v890
        %v892 = vpop.f32.mrb[0].mxu0
        %893 = vmatprep.mubr.bf16.mxu0 0
        %894 = vmatmul.mubr.bf16.gmra.mrb[0].mxu0 %v777
        %v895 = vpop.f32.mrb[0].mxu0
        %v896 = vadd.f32 0.0, %v895
        %v897 = vpop.f32.mrb[0].mxu0
        %v898 = vpop.f32.mrb[0].mxu0
        %v899 = vadd.f32 0.0, %v898
        %v900 = vpop.f32.mrb[0].mxu0
        %901 = vmatprep.mubr.bf16.mxu0 0
        %902 = vmatmul.mubr.bf16.gmra.mrb[0].mxu0 %v779
        %v903 = vpop.f32.mrb[0].mxu0
        %v904 = vadd.f32 0.0, %v903
        %v905 = vpop.f32.mrb[0].mxu0
        %v906 = vpop.f32.mrb[0].mxu0
        %v907 = vadd.f32 0.0, %v906
        %v908 = vpop.f32.mrb[0].mxu0
        %909 = vmatprep.mubr.bf16.mxu0 0
        %910 = vmatmul.mubr.bf16.gmra.mrb[0].mxu0 %v781
        %v911 = vpop.f32.mrb[0].mxu0
        %v912 = vadd.f32 0.0, %v911
        %v913 = vpop.f32.mrb[0].mxu0
        %v914 = vpop.f32.mrb[0].mxu0
        %v915 = vadd.f32 0.0, %v914
        %v916 = vpop.f32.mrb[0].mxu0
        %917 = vmatprep.mubr.bf16.mxu0 0
        %918 = vmatmul.mubr.bf16.gmra.mrb[0].mxu0 %v783
        %v919 = vpop.f32.mrb[0].mxu0
        %v920 = vadd.f32 0.0, %v919
        %v921 = vpop.f32.mrb[0].mxu0
        %v922 = vpop.f32.mrb[0].mxu0
        %v923 = vadd.f32 0.0, %v922
        %v924 = vpop.f32.mrb[0].mxu0
        %925 = vmatprep.mubr.bf16.mxu0 0
        %926 = vmatmul.mubr.bf16.gmra.mrb[0].mxu0 %v785
        %v927 = vpop.f32.mrb[0].mxu0
        %v928 = vadd.f32 0.0, %v927
        %v929 = vpop.f32.mrb[0].mxu0
        %v930 = vpop.f32.mrb[0].mxu0
        %v931 = vadd.f32 0.0, %v930
        %v932 = vpop.f32.mrb[0].mxu0
        %933 = vmatprep.mubr.bf16.mxu0 0
        %934 = vmatmul.mubr.bf16.gmra.mrb[0].mxu0 %v787
        %v935 = vpop.f32.mrb[0].mxu0
        %v936 = vadd.f32 0.0, %v935
        %v937 = vpop.f32.mrb[0].mxu0
        %v938 = vpop.f32.mrb[0].mxu0
        %v939 = vadd.f32 0.0, %v938
        %v940 = vpop.f32.mrb[0].mxu0
        %941 = vmatprep.mubr.bf16.mxu0 0
        %942 = vmatmul.mubr.bf16.gmra.mrb[0].mxu0 %v789
        %v943 = vpop.f32.mrb[0].mxu0
        %v944 = vadd.f32 0.0, %v943
        %v945 = vpop.f32.mrb[0].mxu0
        %v946 = vpop.f32.mrb[0].mxu0
        %v947 = vadd.f32 0.0, %v946
        %v948 = vpop.f32.mrb[0].mxu0
        %949 = vmatprep.mubr.bf16.mxu0 0
        %950 = vmatmul.mubr.bf16.gmra.mrb[0].mxu0 %v791
        %v951 = vpop.f32.mrb[0].mxu0
        %v952 = vadd.f32 0.0, %v951
        %v953 = vpop.f32.mrb[0].mxu0
        %v954 = vpop.f32.mrb[0].mxu0
        %v955 = vadd.f32 0.0, %v954
        %v956 = vpop.f32.mrb[0].mxu0
        %957 = vdwg.mxu0
        %v958 = vld [vmem:[%s251] sm:$0x1]
        %v960 = vlaneseq
        %v961 = vshrl.u32 %v960, 7
        %v962 = vsub.s32 0, %v961
        %v963 = vrot.slane %v958, %v962
        %v965 = vmul.f32 %v832, %v963
        %v966 = vmul.f32 %v835, %v963
        %v967 = vmul.f32 %v840, %v963
        %v968 = vmul.f32 %v843, %v963
        %v969 = vmul.f32 %v848, %v963
        %v970 = vmul.f32 %v851, %v963
        %v971 = vmul.f32 %v856, %v963
        %v972 = vmul.f32 %v859, %v963
        %v973 = vmul.f32 %v864, %v963
        %v974 = vmul.f32 %v867, %v963
        %v975 = vmul.f32 %v872, %v963
        %v976 = vmul.f32 %v875, %v963
        %v977 = vmul.f32 %v880, %v963
        %v978 = vmul.f32 %v883, %v963
        %v979 = vmul.f32 %v888, %v963
        %v980 = vmul.f32 %v891, %v963
        %v981 = vmul.f32 %v896, %v963
        %v982 = vmul.f32 %v899, %v963
        %v983 = vmul.f32 %v904, %v963
        %v984 = vmul.f32 %v907, %v963
        %v985 = vmul.f32 %v912, %v963
        %v986 = vmul.f32 %v915, %v963
        %v987 = vmul.f32 %v920, %v963
        %v988 = vmul.f32 %v923, %v963
        %v989 = vmul.f32 %v928, %v963
        %v990 = vmul.f32 %v931, %v963
        %v991 = vmul.f32 %v936, %v963
        %v992 = vmul.f32 %v939, %v963
        %v993 = vmul.f32 %v944, %v963
        %v994 = vmul.f32 %v947, %v963
        %v995 = vmul.f32 %v952, %v963
        %v996 = vmul.f32 %v955, %v963
        %v997 = vld [vmem:[%s254] sm:$0x1]
        %v999 = vlaneseq
        %v1000 = vshrl.u32 %v999, 7
        %v1001 = vsub.s32 0, %v1000
        %v1002 = vrot.slane %v997, %v1001
        %v1004 = vadd.f32 %v965, %v1002
        %v1005 = vadd.f32 %v966, %v1002
        %v1006 = vadd.f32 %v967, %v1002
        %v1007 = vadd.f32 %v968, %v1002
        %v1008 = vadd.f32 %v969, %v1002
        %v1009 = vadd.f32 %v970, %v1002
        %v1010 = vadd.f32 %v971, %v1002
        %v1011 = vadd.f32 %v972, %v1002
        %v1012 = vadd.f32 %v973, %v1002
        %v1013 = vadd.f32 %v974, %v1002
        %v1014 = vadd.f32 %v975, %v1002
        %v1015 = vadd.f32 %v976, %v1002
        %v1016 = vadd.f32 %v977, %v1002
        %v1017 = vadd.f32 %v978, %v1002
        %v1018 = vadd.f32 %v979, %v1002
        %v1019 = vadd.f32 %v980, %v1002
        %v1020 = vadd.f32 %v981, %v1002
        %v1021 = vadd.f32 %v982, %v1002
        %v1022 = vadd.f32 %v983, %v1002
        %v1023 = vadd.f32 %v984, %v1002
        %v1024 = vadd.f32 %v985, %v1002
        %v1025 = vadd.f32 %v986, %v1002
        %v1026 = vadd.f32 %v987, %v1002
        %v1027 = vadd.f32 %v988, %v1002
        %v1028 = vadd.f32 %v989, %v1002
        %v1029 = vadd.f32 %v990, %v1002
        %v1030 = vadd.f32 %v991, %v1002
        %v1031 = vadd.f32 %v992, %v1002
        %v1032 = vadd.f32 %v993, %v1002
        %v1033 = vadd.f32 %v994, %v1002
        %v1034 = vadd.f32 %v995, %v1002
        %v1035 = vadd.f32 %v996, %v1002
        %v1036 = vmax.f32 %v1004, 0.0
        %v1037 = vmax.f32 %v1005, 0.0
        %v1038 = vmax.f32 %v1006, 0.0
        %v1039 = vmax.f32 %v1007, 0.0
        %v1040 = vmax.f32 %v1008, 0.0
        %v1041 = vmax.f32 %v1009, 0.0
        %v1042 = vmax.f32 %v1010, 0.0
        %v1043 = vmax.f32 %v1011, 0.0
        %v1044 = vmax.f32 %v1012, 0.0
        %v1045 = vmax.f32 %v1013, 0.0
        %v1046 = vmax.f32 %v1014, 0.0
        %v1047 = vmax.f32 %v1015, 0.0
        %v1048 = vmax.f32 %v1016, 0.0
        %v1049 = vmax.f32 %v1017, 0.0
        %v1050 = vmax.f32 %v1018, 0.0
        %v1051 = vmax.f32 %v1019, 0.0
        %v1052 = vmax.f32 %v1020, 0.0
        %v1053 = vmax.f32 %v1021, 0.0
        %v1054 = vmax.f32 %v1022, 0.0
        %v1055 = vmax.f32 %v1023, 0.0
        %v1056 = vmax.f32 %v1024, 0.0
        %v1057 = vmax.f32 %v1025, 0.0
        %v1058 = vmax.f32 %v1026, 0.0
        %v1059 = vmax.f32 %v1027, 0.0
        %v1060 = vmax.f32 %v1028, 0.0
        %v1061 = vmax.f32 %v1029, 0.0
        %v1062 = vmax.f32 %v1030, 0.0
        %v1063 = vmax.f32 %v1031, 0.0
        %v1064 = vmax.f32 %v1032, 0.0
        %v1065 = vmax.f32 %v1033, 0.0
        %v1066 = vmax.f32 %v1034, 0.0
        %v1067 = vmax.f32 %v1035, 0.0
        %1068 = vst [vmem:[%s239] sm:$0xff] %v1036
        %1069 = vst [vmem:[%s239 + $0x8] sm:$0xff] %v1037
        %1070 = vst [vmem:[%s239 + $0x10] sm:$0xff] %v1038
        %1071 = vst [vmem:[%s239 + $0x18] sm:$0xff] %v1039
        %1072 = vst [vmem:[%s239 + $0x20] sm:$0xff] %v1040
        %1073 = vst [vmem:[%s239 + $0x28] sm:$0xff] %v1041
        %1074 = vst [vmem:[%s239 + $0x30] sm:$0xff] %v1042
        %1075 = vst [vmem:[%s239 + $0x38] sm:$0xff] %v1043
        %1076 = vst [vmem:[%s239 + $0x40] sm:$0xff] %v1044
        %1077 = vst [vmem:[%s239 + $0x48] sm:$0xff] %v1045
        %1078 = vst [vmem:[%s239 + $0x50] sm:$0xff] %v1046
        %1079 = vst [vmem:[%s239 + $0x58] sm:$0xff] %v1047
        %1080 = vst [vmem:[%s239 + $0x60] sm:$0xff] %v1048
        %1081 = vst [vmem:[%s239 + $0x68] sm:$0xff] %v1049
        %1082 = vst [vmem:[%s239 + $0x70] sm:$0xff] %v1050
        %1083 = vst [vmem:[%s239 + $0x78] sm:$0xff] %v1051
        %1084 = vst [vmem:[%s239 + $0x80] sm:$0xff] %v1052
        %1085 = vst [vmem:[%s239 + $0x88] sm:$0xff] %v1053
        %1086 = vst [vmem:[%s239 + $0x90] sm:$0xff] %v1054
        %1087 = vst [vmem:[%s239 + $0x98] sm:$0xff] %v1055
        %1088 = vst [vmem:[%s239 + $0xa0] sm:$0xff] %v1056
        %1089 = vst [vmem:[%s239 + $0xa8] sm:$0xff] %v1057
        %1090 = vst [vmem:[%s239 + $0xb0] sm:$0xff] %v1058
        %1091 = vst [vmem:[%s239 + $0xb8] sm:$0xff] %v1059
        %1092 = vst [vmem:[%s239 + $0xc0] sm:$0xff] %v1060
        %1093 = vst [vmem:[%s239 + $0xc8] sm:$0xff] %v1061
        %1094 = vst [vmem:[%s239 + $0xd0] sm:$0xff] %v1062
        %1095 = vst [vmem:[%s239 + $0xd8] sm:$0xff] %v1063
        %1096 = vst [vmem:[%s239 + $0xe0] sm:$0xff] %v1064
        %1097 = vst [vmem:[%s239 + $0xe8] sm:$0xff] %v1065
        %1098 = vst [vmem:[%s239 + $0xf0] sm:$0xff] %v1066
        %1099 = vst [vmem:[%s239 + $0xf8] sm:$0xff] %v1067
        %s1100 = sand.u32 %s144, 1
        %s1101 = scalar_lea.sflag [#allocation3], %s1100
        %s1102 = sand.u32 %s144, 1
        %s1103 = smul.addr %s1102, 256
        %s1104 = scalar_lea.vmem [#allocation2], %s1103
        // Predicated region
        $region37: #{tpu_custom_call.1} parent=35 // pred_check
          %p1105 = pneg %p154
        $region38: #{tpu_custom_call.1} parent=35 // pred_check_branch
          %1107 = sbr.rel (%p1105) target = $region40
        $region39: #{tpu_custom_call.1} parent=35 // pred_region
          %s1109 = ssub.s32 4096, 4096
          %1110 = vsyncadd %s1101, %s1109
          %s1111 = smul.addr %s22, 32
          %s1112 = sadd.s32 %s23, %s1111
          %s1113 = smul.addr %s1112, 128
          %s1114 = scalar_lea.hbm %s4, %s1113
          %s1115 = sshll.u32 %s1104, 4
          %s1116 = int_to_ptr.vmem [resolvable:$true] %s1115
          %1121 = dma.vmem_to_hbm [thread:$0]  %s1116, 4096, %s1114, %s1101, 128, 128, 8
        $region40: #{tpu_custom_call.1} parent=35 // pred_fallthru
          _
      $region36: #{tpu_custom_call.1} parent=5 // pred_fallthru
        _
      %p1122 = scmp.le.s32.totalorder 2, %s13
      // Predicated region
      $region41: #{tpu_custom_call.1} parent=5 // pred_check
        %p1123 = pneg %p1122
      $region42: #{tpu_custom_call.1} parent=5 // pred_check_branch
        %1125 = sbr.rel (%p1123) target = $region44
      $region43: #{tpu_custom_call.1} parent=5 // pred_region
        %s1126 = ssub.s32 %s13, 2
        // Predicated region
        $region45: #{tpu_custom_call.1} parent=43 // pred_check
          %p1127 = pneg %p160
        $region46: #{tpu_custom_call.1} parent=43 // pred_check_branch
          %1129 = sbr.rel (%p1127) target = $region48
        $region47: #{tpu_custom_call.1} parent=43 // pred_region
          %s1130 = sand.u32 %s145, 1
          %s1131 = scalar_lea.sflag [#allocation3], %s1130
          %s1132 = sand.u32 %s145, 1
          %s1133 = smul.addr %s1132, 256
          %s1134 = scalar_lea.vmem [#allocation2], %s1133
          %1135 = dma.done %s1131, 4096
        $region48: #{tpu_custom_call.1} parent=43 // pred_fallthru
          _
      $region44: #{tpu_custom_call.1} parent=5 // pred_fallthru
        _
    $region6: #{tpu_custom_call.1} parent=1 // loop_footer
      %s17 = sadd.s32 1, %s13
    $region7: #{tpu_custom_call.1} parent=1 // loop_footer_branch
      %12 = sbr.rel target = $region3
    $region8: #{tpu_custom_call.1} parent=1 // loop_exit
      _
    %1136 = vsyncpa [#allocation3], 1
    %s1137 = scalar_lea.sflag [#allocation3], 1
    %1138 = vsyncpa %s1137, 1

</llo_original>
